<compile_context>
chip_gen: v5e
topology: v5e:2x2
jax: 0.10.0
libtpu: 0.0.40
codegen_flags: <defaults>
</compile_context>

<pallas_src>
import functools

import jax
import jax.numpy as jnp
from jax.experimental import pallas as pl
from jax.experimental.pallas import tpu as pltpu

EPS = 1e-5                 # BatchNorm epsilon (PyTorch default)
NEG_INF = jnp.float32(-1e30)


def emgcnn_kernel(x_ref,
                  w1_ref, b1_ref, w2_ref, b2_ref, w3_ref, b3_ref,
                  wfc_ref, bfc_ref,
                  out_ref, *, ew_dtype):
    """One batch tile.  Everything lives in (C, TILE_B) layout: batch on the
    LANE axis, channels on sublanes, so all intermediates are lane-dense and
    the output store is a full, unmasked (8, TILE_B) block."""
    x = x_ref[...]                                         # (8, TILE_B) bf16

    def layer(w_ref, b_ref, h):
        # MXU matmul with f32 accumulation; bias add + ReLU in ew_dtype
        # (f32 by default; bf16 on v6e/v7x halves VPU/VMEM traffic).
        acc = jnp.dot(w_ref[...], h, preferred_element_type=jnp.float32)
        acc = jnp.maximum(acc.astype(ew_dtype) + b_ref[...].astype(ew_dtype), 0.0)
        return acc.astype(jnp.bfloat16)                    # bf16 into next MXU op

    h = layer(w1_ref, b1_ref, x)                           # (16, TILE_B)
    h = layer(w2_ref, b2_ref, h)                           # (32, TILE_B)
    h = layer(w3_ref, b3_ref, h)                           # (64, TILE_B)

    # fc: class dim padded to 8 sublanes; the pad class has weight 0 and bias
    # -1e30, so exp() gives it exactly zero probability.
    logits = jnp.dot(wfc_ref[...], h,
                     preferred_element_type=jnp.float32) + bfc_ref[...]   # (8, TILE_B)

    # Softmax over the class (sublane) axis == PyTorch dim=1.  Exact divide so
    # rows sum to 1 (approx reciprocal previously broke normalization).
    m = jnp.max(logits, axis=0, keepdims=True)             # (1, TILE_B)
    e = jnp.exp(logits - m)
    denom = jnp.sum(e, axis=0, keepdims=True)              # (1, TILE_B)
    out_ref[...] = e / denom


def make_raw_params(key, input_channels=8, num_classes=7):
    """Deterministic synthetic parameters with the PyTorch module's shapes."""
    dims = [(input_channels, 16), (16, 32), (32, 64)]
    keys = jax.random.split(key, 6 * len(dims) + 2)
    raw = {}
    ki = 0
    for li, (cin, cout) in enumerate(dims, start=1):
        raw[f"w{li}"] = jax.random.normal(keys[ki], (cout, cin), jnp.float32) * 0.2; ki += 1
        raw[f"b{li}"] = jax.random.normal(keys[ki], (cout,), jnp.float32) * 0.1; ki += 1
        raw[f"gamma{li}"] = 1.0 + 0.1 * jax.random.normal(keys[ki], (cout,), jnp.float32); ki += 1
        raw[f"beta{li}"] = 0.1 * jax.random.normal(keys[ki], (cout,), jnp.float32); ki += 1
        raw[f"mean{li}"] = 0.1 * jax.random.normal(keys[ki], (cout,), jnp.float32); ki += 1
        raw[f"var{li}"] = jax.random.uniform(keys[ki], (cout,), jnp.float32, 0.5, 1.5); ki += 1
    raw["wfc"] = jax.random.normal(keys[ki], (num_classes, 64), jnp.float32) * 0.2; ki += 1
    raw["bfc"] = jax.random.normal(keys[ki], (num_classes,), jnp.float32) * 0.1; ki += 1
    return raw


def fold_params(raw):
    """Fold eval-mode BatchNorm into the conv weights/bias (bf16 matmul weights)
    and pad the fc class dim up to a multiple of 8 sublanes."""
    p = {}
    for li in (1, 2, 3):
        s = raw[f"gamma{li}"] / jnp.sqrt(raw[f"var{li}"] + EPS)
        t = raw[f"beta{li}"] - raw[f"mean{li}"] * s
        p[f"w{li}"] = (raw[f"w{li}"] * s[:, None]).astype(jnp.bfloat16)   # (cout, cin)
        p[f"b{li}"] = ((raw[f"b{li}"] * s + t)[:, None]).astype(jnp.float32)  # (cout, 1)
    nc = raw["wfc"].shape[0]
    nc_pad = ((nc + 7) // 8) * 8
    # Pad class rows: zero weights + -1e30 bias -> zero softmax probability.
    p["wfc"] = jnp.pad(raw["wfc"], ((0, nc_pad - nc), (0, 0))).astype(jnp.bfloat16)
    p["bfc"] = jnp.pad(raw["bfc"][:, None].astype(jnp.float32),
                       ((0, nc_pad - nc), (0, 0)), constant_values=NEG_INF)
    return p


@functools.partial(jax.jit,
                   static_argnames=("num_classes", "max_tile_b", "elementwise_bf16"))
def emgcnn_forward(x_ncl, kparams, num_classes=7, max_tile_b=8192,
                   elementwise_bf16=False):
    """x_ncl: (B, C, 1) float32 in PyTorch NCL layout. Returns (B, num_classes)."""
    B, C, _ = x_ncl.shape
    nc_pad = kparams["wfc"].shape[0]

    # Batch tile: largest multiple of 128 lanes up to max_tile_b (per-step grid
    # overhead amortizes over fat tiles).  B is padded up to a whole number of
    # tiles; padded columns are discarded after the kernel.
    tile_b = min(max(128, (max_tile_b // 128) * 128), ((B + 127) // 128) * 128)
    b_pad = ((B + tile_b - 1) // tile_b) * tile_b

    # Single fused wrapper copy: reshape (metadata only) -> transpose -> bf16
    # cast -> pad, producing the lane-dense (C, b_pad) bf16 input slab.
    xt = jnp.transpose(x_ncl.reshape(B, C)).astype(jnp.bfloat16)
    if b_pad != B:
        xt = jnp.pad(xt, ((0, 0), (0, b_pad - B)))

    order = ("w1", "b1", "w2", "b2", "w3", "b3", "wfc", "bfc")
    args = [xt] + [kparams[k] for k in order]
    # Weights/biases: whole-array blocks with constant index_maps -> they stay
    # VMEM-resident across all grid steps (no per-step parameter DMA).
    weight_specs = [pl.BlockSpec(kparams[k].shape, lambda i: (0, 0)) for k in order]

    ew_dtype = jnp.bfloat16 if elementwise_bf16 else jnp.float32

    grid_spec = pltpu.PrefetchScalarGridSpec(
        num_scalar_prefetch=0,
        grid=(b_pad // tile_b,),
        in_specs=[pl.BlockSpec((C, tile_b), lambda i: (0, i))] + weight_specs,
        out_specs=pl.BlockSpec((nc_pad, tile_b), lambda i: (0, i)),
    )

    out_t = pl.pallas_call(
        functools.partial(emgcnn_kernel, ew_dtype=ew_dtype),
        out_shape=jax.ShapeDtypeStruct((nc_pad, b_pad), jnp.float32),
        grid_spec=grid_spec,
        compiler_params=pltpu.CompilerParams(
            # On v7x use pltpu.CORE_PARALLEL here to shard batch tiles across
            # the two TensorCores; "parallel" is kept for portability.
            dimension_semantics=("parallel",),
            # 32 MiB is ample for tile_b=8192 (~7 MiB live) and safe on v7x's
            # 64 MiB VMEM; on v6e this can be raised with larger max_tile_b.
            vmem_limit_bytes=32 * 1024 * 1024,
        ),
    )(*args)

    # Back to PyTorch (B, num_classes) layout; drop padded classes + batch cols.
    return out_t[:num_classes, :B].T


# ---------------- references ----------------

def emgcnn_reference_folded(x_ncl, kparams, num_classes=7):
    """Same folded/bf16-matmul numerics as the default kernel path, natural
    (B, C) layout, exact softmax."""
    B, C, _ = x_ncl.shape
    h = x_ncl.reshape(B, C).astype(jnp.bfloat16)
    for li in (1, 2, 3):
        w, b = kparams[f"w{li}"], kparams[f"b{li}"]
        z = jnp.dot(h, w.T, preferred_element_type=jnp.float32) + b[:, 0][None, :]
        h = jnp.maximum(z, 0.0).astype(jnp.bfloat16)
    logits = (jnp.dot(h, kparams["wfc"][:num_classes].T,
                      preferred_element_type=jnp.float32)
              + kparams["bfc"][:num_classes, 0][None, :])
    return jax.nn.softmax(logits, axis=1)


def emgcnn_reference_f32(x_ncl, raw):
    """Full-f32 eval-mode forward matching the PyTorch module."""
    B, C, _ = x_ncl.shape
    hi = jax.lax.Precision.HIGHEST
    h = x_ncl.reshape(B, C).astype(jnp.float32)
    for li in (1, 2, 3):
        h = jnp.dot(h, raw[f"w{li}"].T, precision=hi) + raw[f"b{li}"][None, :]
        h = (h - raw[f"mean{li}"][None, :]) / jnp.sqrt(raw[f"var{li}"][None, :] + EPS)
        h = h * raw[f"gamma{li}"][None, :] + raw[f"beta{li}"][None, :]
        h = jnp.maximum(h, 0.0)          # MaxPool1d(1, stride=1) is identity
    logits = jnp.dot(h, raw["wfc"].T, precision=hi) + raw["bfc"][None, :]
    return jax.nn.softmax(logits, axis=1)


if __name__ == "__main__":
    key = jax.random.PRNGKey(0)
    pkey, xkey1, xkey2 = jax.random.split(key, 3)

    num_classes, C, L = 7, 8, 1          # L must be 1 for the 64*1 fc input
    raw = make_raw_params(pkey, input_channels=C, num_classes=num_classes)
    kparams = fold_params(raw)

    # Small batch (module-consistent shape), single tile.
    x_small = jax.random.normal(xkey1, (2, C, L), jnp.float32)
    out_small = jax.block_until_ready(
        emgcnn_forward(x_small, kparams, num_classes=num_classes))
    assert out_small.shape == (2, num_classes)

    # Larger batch that is NOT a multiple of the tile -> exercises grid + padding.
    B2 = 600
    x_big = jax.random.normal(xkey2, (B2, C, L), jnp.float32)
    out_big = jax.block_until_ready(
        emgcnn_forward(x_big, kparams, num_classes=num_classes, max_tile_b=256))
    assert out_big.shape == (B2, num_classes)

    for x, out in ((x_small, out_small), (x_big, out_big)):
        ref_folded = emgcnn_reference_folded(x, kparams, num_classes)
        ref_f32 = emgcnn_reference_f32(x, raw)
        assert jnp.allclose(out, ref_folded, atol=2e-3), "mismatch vs folded bf16 reference"
        assert jnp.allclose(out, ref_f32, atol=1e-2), "mismatch vs full-f32 reference"
        assert jnp.allclose(jnp.sum(out, axis=1), 1.0, atol=2e-3), "softmax not normalized"

    # v6e/v7x fast path: bias add + ReLU in bf16 between the matmuls (keep the
    # default f32 elementwise path on v5e, which has no bf16 VPU).
    out_bf16 = jax.block_until_ready(
        emgcnn_forward(x_big, kparams, num_classes=num_classes, max_tile_b=256,
                       elementwise_bf16=True))
    assert out_bf16.shape == (B2, num_classes)
    assert jnp.allclose(out_bf16, emgcnn_reference_f32(x_big, raw), atol=3e-2), \
        "bf16-elementwise path mismatch vs f32 reference"
    assert jnp.allclose(jnp.sum(out_bf16, axis=1), 1.0, atol=2e-3), \
        "bf16-elementwise softmax not normalized"

    print("KERNEL_OK")
</pallas_src>

<mosaic_0001>
module attributes {stable_mosaic.version = 11 : i64} {
  func.func @emgcnn_kernel(%arg0: i32, %arg1: memref<8x128xbf16, #tpu.memory_space<vmem>>, %arg2: memref<16x8xbf16, #tpu.memory_space<vmem>>, %arg3: memref<16x1xf32, #tpu.memory_space<vmem>>, %arg4: memref<32x16xbf16, #tpu.memory_space<vmem>>, %arg5: memref<32x1xf32, #tpu.memory_space<vmem>>, %arg6: memref<64x32xbf16, #tpu.memory_space<vmem>>, %arg7: memref<64x1xf32, #tpu.memory_space<vmem>>, %arg8: memref<8x64xbf16, #tpu.memory_space<vmem>>, %arg9: memref<8x1xf32, #tpu.memory_space<vmem>>, %arg10: memref<8x128xf32, #tpu.memory_space<vmem>>) attributes {dimension_semantics = [#tpu.dimension_semantics<parallel>], iteration_bounds = array<i64: 1>, scalar_prefetch = 0 : i64, scratch_operands = 0 : i64, tpu.core_type = #tpu.core_type<tc>, window_params = [{transform_indices = @transform_0, window_bounds = array<i64: 8, 128>}, {pipeline_mode = #tpu.pipeline_mode<synchronous>, transform_indices = @transform_1, window_bounds = array<i64: 16, 8>}, {pipeline_mode = #tpu.pipeline_mode<synchronous>, transform_indices = @transform_2, window_bounds = array<i64: 16, 1>}, {pipeline_mode = #tpu.pipeline_mode<synchronous>, transform_indices = @transform_3, window_bounds = array<i64: 32, 16>}, {pipeline_mode = #tpu.pipeline_mode<synchronous>, transform_indices = @transform_4, window_bounds = array<i64: 32, 1>}, {pipeline_mode = #tpu.pipeline_mode<synchronous>, transform_indices = @transform_5, window_bounds = array<i64: 64, 32>}, {pipeline_mode = #tpu.pipeline_mode<synchronous>, transform_indices = @transform_6, window_bounds = array<i64: 64, 1>}, {pipeline_mode = #tpu.pipeline_mode<synchronous>, transform_indices = @transform_7, window_bounds = array<i64: 8, 64>}, {pipeline_mode = #tpu.pipeline_mode<synchronous>, transform_indices = @transform_8, window_bounds = array<i64: 8, 1>}, {transform_indices = @transform_9, window_bounds = array<i64: 8, 128>}]} {
    %c0 = arith.constant 0 : index
    %c0_0 = arith.constant 0 : index
    %0 = vector.load %arg1[%c0, %c0_0] : memref<8x128xbf16, #tpu.memory_space<vmem>>, vector<8x128xbf16>
    %c0_1 = arith.constant 0 : index
    %c0_2 = arith.constant 0 : index
    %1 = vector.load %arg2[%c0_1, %c0_2] : memref<16x8xbf16, #tpu.memory_space<vmem>>, vector<16x8xbf16>
    %cst = arith.constant dense<0.000000e+00> : vector<16x128xf32>
    %2 = tpu.matmul %1, %0, %cst {dimension_numbers = #tpu.dot_dimension_numbers<[1], [0], [0], [1], [0, 0, 1, 1], [], []>} : vector<16x8xbf16>, vector<8x128xbf16>, vector<16x128xf32> -> vector<16x128xf32>
    %c0_3 = arith.constant 0 : index
    %c0_4 = arith.constant 0 : index
    %3 = vector.load %arg3[%c0_3, %c0_4] : memref<16x1xf32, #tpu.memory_space<vmem>>, vector<16x1xf32>
    %4 = vector.broadcast %3 : vector<16x1xf32> to vector<16x128xf32>
    %5 = arith.addf %2, %4 : vector<16x128xf32>
    %cst_5 = arith.constant 0.000000e+00 : f32
    %6 = vector.broadcast %cst_5 : f32 to vector<16x128xf32>
    %7 = arith.maximumf %5, %6 : vector<16x128xf32>
    %8 = arith.truncf %7 : vector<16x128xf32> to vector<16x128xbf16>
    %c0_6 = arith.constant 0 : index
    %c0_7 = arith.constant 0 : index
    %9 = vector.load %arg4[%c0_6, %c0_7] : memref<32x16xbf16, #tpu.memory_space<vmem>>, vector<32x16xbf16>
    %cst_8 = arith.constant dense<0.000000e+00> : vector<32x128xf32>
    %10 = tpu.matmul %9, %8, %cst_8 {dimension_numbers = #tpu.dot_dimension_numbers<[1], [0], [0], [1], [0, 0, 1, 1], [], []>} : vector<32x16xbf16>, vector<16x128xbf16>, vector<32x128xf32> -> vector<32x128xf32>
    %c0_9 = arith.constant 0 : index
    %c0_10 = arith.constant 0 : index
    %11 = vector.load %arg5[%c0_9, %c0_10] : memref<32x1xf32, #tpu.memory_space<vmem>>, vector<32x1xf32>
    %12 = vector.broadcast %11 : vector<32x1xf32> to vector<32x128xf32>
    %13 = arith.addf %10, %12 : vector<32x128xf32>
    %cst_11 = arith.constant 0.000000e+00 : f32
    %14 = vector.broadcast %cst_11 : f32 to vector<32x128xf32>
    %15 = arith.maximumf %13, %14 : vector<32x128xf32>
    %16 = arith.truncf %15 : vector<32x128xf32> to vector<32x128xbf16>
    %c0_12 = arith.constant 0 : index
    %c0_13 = arith.constant 0 : index
    %17 = vector.load %arg6[%c0_12, %c0_13] : memref<64x32xbf16, #tpu.memory_space<vmem>>, vector<64x32xbf16>
    %cst_14 = arith.constant dense<0.000000e+00> : vector<64x128xf32>
    %18 = tpu.matmul %17, %16, %cst_14 {dimension_numbers = #tpu.dot_dimension_numbers<[1], [0], [0], [1], [0, 0, 1, 1], [], []>} : vector<64x32xbf16>, vector<32x128xbf16>, vector<64x128xf32> -> vector<64x128xf32>
    %c0_15 = arith.constant 0 : index
    %c0_16 = arith.constant 0 : index
    %19 = vector.load %arg7[%c0_15, %c0_16] : memref<64x1xf32, #tpu.memory_space<vmem>>, vector<64x1xf32>
    %20 = vector.broadcast %19 : vector<64x1xf32> to vector<64x128xf32>
    %21 = arith.addf %18, %20 : vector<64x128xf32>
    %cst_17 = arith.constant 0.000000e+00 : f32
    %22 = vector.broadcast %cst_17 : f32 to vector<64x128xf32>
    %23 = arith.maximumf %21, %22 : vector<64x128xf32>
    %24 = arith.truncf %23 : vector<64x128xf32> to vector<64x128xbf16>
    %c0_18 = arith.constant 0 : index
    %c0_19 = arith.constant 0 : index
    %25 = vector.load %arg8[%c0_18, %c0_19] : memref<8x64xbf16, #tpu.memory_space<vmem>>, vector<8x64xbf16>
    %cst_20 = arith.constant dense<0.000000e+00> : vector<8x128xf32>
    %26 = tpu.matmul %25, %24, %cst_20 {dimension_numbers = #tpu.dot_dimension_numbers<[1], [0], [0], [1], [0, 0, 1, 1], [], []>} : vector<8x64xbf16>, vector<64x128xbf16>, vector<8x128xf32> -> vector<8x128xf32>
    %c0_21 = arith.constant 0 : index
    %c0_22 = arith.constant 0 : index
    %27 = vector.load %arg9[%c0_21, %c0_22] : memref<8x1xf32, #tpu.memory_space<vmem>>, vector<8x1xf32>
    %28 = vector.broadcast %27 : vector<8x1xf32> to vector<8x128xf32>
    %29 = arith.addf %26, %28 : vector<8x128xf32>
    %cst_23 = arith.constant dense<0xFF800000> : vector<128xf32>
    %30 = vector.multi_reduction <maximumf>, %29, %cst_23 [0] : vector<8x128xf32> to vector<128xf32>
    %31 = vector.shape_cast %30 : vector<128xf32> to vector<1x128xf32>
    %32 = vector.broadcast %31 : vector<1x128xf32> to vector<8x128xf32>
    %33 = arith.subf %29, %32 : vector<8x128xf32>
    %34 = math.exp %33 : vector<8x128xf32>
    %cst_24 = arith.constant dense<0.000000e+00> : vector<128xf32>
    %35 = vector.multi_reduction <add>, %34, %cst_24 [0] : vector<8x128xf32> to vector<128xf32>
    %36 = vector.shape_cast %35 : vector<128xf32> to vector<1x128xf32>
    %37 = vector.broadcast %36 : vector<1x128xf32> to vector<8x128xf32>
    %38 = arith.divf %34, %37 : vector<8x128xf32>
    %c0_25 = arith.constant 0 : index
    %c0_26 = arith.constant 0 : index
    %39 = vector.load %arg10[%c0_25, %c0_26] : memref<8x128xf32, #tpu.memory_space<vmem>>, vector<8x128xf32>
    tpu.vector_store %arg10[%c0_25, %c0_26], %38 {strides = array<i32>} : memref<8x128xf32, #tpu.memory_space<vmem>>, vector<8x128xf32>,
    return
  }
  func.func @transform_0(%arg0: i32) -> (i32, i32) {
    %c0_i32 = arith.constant 0 : i32
    %c0_i32_0 = arith.constant 0 : i32
    return %c0_i32, %arg0 : i32, i32
  }
  func.func @transform_1(%arg0: i32) -> (i32, i32) {
    %c0_i32 = arith.constant 0 : i32
    %c0_i32_0 = arith.constant 0 : i32
    %c0_i32_1 = arith.constant 0 : i32
    return %c0_i32, %c0_i32_0 : i32, i32
  }
  func.func @transform_2(%arg0: i32) -> (i32, i32) {
    %c0_i32 = arith.constant 0 : i32
    %c0_i32_0 = arith.constant 0 : i32
    %c0_i32_1 = arith.constant 0 : i32
    return %c0_i32, %c0_i32_0 : i32, i32
  }
  func.func @transform_3(%arg0: i32) -> (i32, i32) {
    %c0_i32 = arith.constant 0 : i32
    %c0_i32_0 = arith.constant 0 : i32
    %c0_i32_1 = arith.constant 0 : i32
    return %c0_i32, %c0_i32_0 : i32, i32
  }
  func.func @transform_4(%arg0: i32) -> (i32, i32) {
    %c0_i32 = arith.constant 0 : i32
    %c0_i32_0 = arith.constant 0 : i32
    %c0_i32_1 = arith.constant 0 : i32
    return %c0_i32, %c0_i32_0 : i32, i32
  }
  func.func @transform_5(%arg0: i32) -> (i32, i32) {
    %c0_i32 = arith.constant 0 : i32
    %c0_i32_0 = arith.constant 0 : i32
    %c0_i32_1 = arith.constant 0 : i32
    return %c0_i32, %c0_i32_0 : i32, i32
  }
  func.func @transform_6(%arg0: i32) -> (i32, i32) {
    %c0_i32 = arith.constant 0 : i32
    %c0_i32_0 = arith.constant 0 : i32
    %c0_i32_1 = arith.constant 0 : i32
    return %c0_i32, %c0_i32_0 : i32, i32
  }
  func.func @transform_7(%arg0: i32) -> (i32, i32) {
    %c0_i32 = arith.constant 0 : i32
    %c0_i32_0 = arith.constant 0 : i32
    %c0_i32_1 = arith.constant 0 : i32
    return %c0_i32, %c0_i32_0 : i32, i32
  }
  func.func @transform_8(%arg0: i32) -> (i32, i32) {
    %c0_i32 = arith.constant 0 : i32
    %c0_i32_0 = arith.constant 0 : i32
    %c0_i32_1 = arith.constant 0 : i32
    return %c0_i32, %c0_i32_0 : i32, i32
  }
  func.func @transform_9(%arg0: i32) -> (i32, i32) {
    %c0_i32 = arith.constant 0 : i32
    %c0_i32_0 = arith.constant 0 : i32
    return %c0_i32, %arg0 : i32, i32
  }
}

</mosaic_0001>

<llo_original>
// kernel: emgcnn_forward.1
$region0: #{emgcnn_forward.1}
  #allocation0 [shape = 'u32[]', space=smem, size = 0x4, offset = 0x4, fixed_abs, tag = 'smem constant byte address 0x4 - core index']
  #allocation1 [shape = 'u32[72,128]{1,0:T(1,128)}', space=vmem, size = 0x9000, scoped, tag = 'internal scratch']
  %s0 = inlined_call_operand.vmem [shape: bf16[8,128], index: 0, kind: input, shape index: {}]
  %s1 = inlined_call_operand.vmem [shape: bf16[16,8], index: 1, kind: input, shape index: {}]
  %s2 = inlined_call_operand.vmem [shape: f32[16,1], index: 2, kind: input, shape index: {}]
  %s3 = inlined_call_operand.vmem [shape: bf16[32,16], index: 3, kind: input, shape index: {}]
  %s4 = inlined_call_operand.vmem [shape: f32[32,1], index: 4, kind: input, shape index: {}]
  %s5 = inlined_call_operand.vmem [shape: bf16[64,32], index: 5, kind: input, shape index: {}]
  %s6 = inlined_call_operand.vmem [shape: f32[64,1], index: 6, kind: input, shape index: {}]
  %s7 = inlined_call_operand.vmem [shape: bf16[8,64], index: 7, kind: input, shape index: {}]
  %s8 = inlined_call_operand.vmem [shape: f32[8,1], index: 8, kind: input, shape index: {}]
  %s9 = inlined_call_operand.vmem [shape: f32[8,128], index: 9, kind: output, shape index: {}]
  %s10 = sld [smem:[#allocation0]]
  $region46: #{emgcnn_forward.1} parent=0
    _
  %s12 = ssub.s32 1, %s10
  %s13 = scalar_select 0, %s12, %s10
  // Predicated region
  $region2: #{emgcnn_forward.1} parent=0 // pred_check
    _
  $region3: #{emgcnn_forward.1} parent=0 // pred_check_branch
    %15 = sbr.rel (0) target = $region5
  $region4: #{emgcnn_forward.1} parent=0 // pred_region
    _
  $region5: #{emgcnn_forward.1} parent=0 // pred_fallthru
    _
  // Predicated region
  $region6: #{emgcnn_forward.1} parent=0 // pred_check
    _
  $region7: #{emgcnn_forward.1} parent=0 // pred_check_branch
    %17 = sbr.rel (0) target = $region9
  $region8: #{emgcnn_forward.1} parent=0 // pred_region
    _
  $region9: #{emgcnn_forward.1} parent=0 // pred_fallthru
    _
  // Predicated region
  $region10: #{emgcnn_forward.1} parent=0 // pred_check
    _
  $region11: #{emgcnn_forward.1} parent=0 // pred_check_branch
    %19 = sbr.rel (0) target = $region13
  $region12: #{emgcnn_forward.1} parent=0 // pred_region
    _
  $region13: #{emgcnn_forward.1} parent=0 // pred_fallthru
    _
  // Predicated region
  $region14: #{emgcnn_forward.1} parent=0 // pred_check
    _
  $region15: #{emgcnn_forward.1} parent=0 // pred_check_branch
    %21 = sbr.rel (0) target = $region17
  $region16: #{emgcnn_forward.1} parent=0 // pred_region
    _
  $region17: #{emgcnn_forward.1} parent=0 // pred_fallthru
    _
  // Predicated region
  $region18: #{emgcnn_forward.1} parent=0 // pred_check
    _
  $region19: #{emgcnn_forward.1} parent=0 // pred_check_branch
    %23 = sbr.rel (0) target = $region21
  $region20: #{emgcnn_forward.1} parent=0 // pred_region
    _
  $region21: #{emgcnn_forward.1} parent=0 // pred_fallthru
    _
  // Predicated region
  $region22: #{emgcnn_forward.1} parent=0 // pred_check
    _
  $region23: #{emgcnn_forward.1} parent=0 // pred_check_branch
    %25 = sbr.rel (0) target = $region25
  $region24: #{emgcnn_forward.1} parent=0 // pred_region
    _
  $region25: #{emgcnn_forward.1} parent=0 // pred_fallthru
    _
  // Predicated region
  $region26: #{emgcnn_forward.1} parent=0 // pred_check
    _
  $region27: #{emgcnn_forward.1} parent=0 // pred_check_branch
    %27 = sbr.rel (0) target = $region29
  $region28: #{emgcnn_forward.1} parent=0 // pred_region
    _
  $region29: #{emgcnn_forward.1} parent=0 // pred_fallthru
    _
  // Predicated region
  $region30: #{emgcnn_forward.1} parent=0 // pred_check
    _
  $region31: #{emgcnn_forward.1} parent=0 // pred_check_branch
    %29 = sbr.rel (0) target = $region33
  $region32: #{emgcnn_forward.1} parent=0 // pred_region
    _
  $region33: #{emgcnn_forward.1} parent=0 // pred_fallthru
    _
  // Predicated region
  $region34: #{emgcnn_forward.1} parent=0 // pred_check
    _
  $region35: #{emgcnn_forward.1} parent=0 // pred_check_branch
    %31 = sbr.rel (0) target = $region37
  $region36: #{emgcnn_forward.1} parent=0 // pred_region
    _
  $region37: #{emgcnn_forward.1} parent=0 // pred_fallthru
    _
  %v33 = vld [vmem:[%s0] sm:$0xf]
  %v34 = vld [vmem:[%s1] sm:$0xf]
  %v35 = vld [vmem:[%s1 + $0x4] sm:$0xf]
  %v36 = vld [vmem:[%s2] sm:$0xff]
  %v37 = vld [vmem:[%s2 + $0x8] sm:$0xff]
  %39 = vset.pattern.permute.xlu0 0
  %40 = vperm.xlu0 %39, %v36
  %v41 = vpop.permute.xlu0 %40
  %44 = vset.pattern.permute.xlu0 0
  %45 = vperm.xlu0 %44, %v37
  %v46 = vpop.permute.xlu0 %45
  %v50 = vunpack.c.l.b16 %v34
  %v51 = vunpack.c.l.b16 %v35
  %v52 = vpack.c.b16 %v51, %v50
  %vm53 = vcmask 64512
  %v55 = vsel %vm53, %v52, 0
  %vm57 = vcmask 1043456
  %v59 = vsel %vm57, %v33, 0
  %61 = vmatpush.bf16.msra.mxu0 0
  %62 = vmatpush.bf16.msra.mxu0 0
  %63 = vmatpush.bf16.msra.mxu0 0
  %64 = vmatpush.bf16.msra.mxu0 0
  %65 = vmatpush.bf16.msra.mxu0 0
  %66 = vmatpush.bf16.msra.mxu0 0
  %67 = vmatpush.bf16.msra.mxu0 0
  %68 = vmatpush.bf16.msra.mxu0 %v59
  %69 = vmatmul.bf16.gmra.mxu0 %v55
  %v70 = vpop.f32.mrf.mxu0
  %v71 = vadd.f32 %v41, %v70
  %v72 = vpop.f32.mrf.mxu0
  %v73 = vadd.f32 %v46, %v72
  %74 = vdwg.mxu0
  %v75 = vmax.f32 %v71, 0.0
  %v76 = vmax.f32 %v73, 0.0
  %v77 = vpack.c.bf16 %v76, %v75
  %v78 = vld [vmem:[%s3] sm:$0xf]
  %v79 = vld [vmem:[%s3 + $0x4] sm:$0xf]
  %v80 = vld [vmem:[%s3 + $0x8] sm:$0xf]
  %v81 = vld [vmem:[%s3 + $0xc] sm:$0xf]
  %v82 = vld [vmem:[%s4] sm:$0xff]
  %v83 = vld [vmem:[%s4 + $0x8] sm:$0xff]
  %v84 = vld [vmem:[%s4 + $0x10] sm:$0xff]
  %v85 = vld [vmem:[%s4 + $0x18] sm:$0xff]
  %87 = vset.pattern.permute.xlu0 0
  %88 = vperm.xlu0 %87, %v82
  %v89 = vpop.permute.xlu0 %88
  %92 = vset.pattern.permute.xlu0 0
  %93 = vperm.xlu0 %92, %v83
  %v94 = vpop.permute.xlu0 %93
  %97 = vset.pattern.permute.xlu0 0
  %98 = vperm.xlu0 %97, %v84
  %v99 = vpop.permute.xlu0 %98
  %102 = vset.pattern.permute.xlu0 0
  %103 = vperm.xlu0 %102, %v85
  %v104 = vpop.permute.xlu0 %103
  %v110 = vunpack.c.l.b16 %v78
  %v111 = vunpack.c.l.b16 %v79
  %v112 = vunpack.c.l.b16 %v80
  %v113 = vunpack.c.l.b16 %v81
  %v114 = vpack.c.b16 %v111, %v110
  %v115 = vpack.c.b16 %v113, %v112
  %vm116 = vcmask 130048
  %v118 = vsel %vm116, %v114, 0
  %v121 = vsel %vm116, %v115, 0
  %123 = vmatpush.bf16.msra.mxu0 0
  %124 = vmatpush.bf16.msra.mxu0 0
  %125 = vmatpush.bf16.msra.mxu0 0
  %126 = vmatpush.bf16.msra.mxu0 0
  %127 = vmatpush.bf16.msra.mxu0 0
  %128 = vmatpush.bf16.msra.mxu0 0
  %129 = vmatpush.bf16.msra.mxu0 0
  %130 = vmatpush.bf16.msra.mxu0 %v77
  %131 = vmatmul.bf16.gmra.mxu0 %v118
  %v132 = vpop.f32.mrf.mxu0
  %v133 = vadd.f32 %v89, %v132
  %v134 = vpop.f32.mrf.mxu0
  %v135 = vadd.f32 %v94, %v134
  %136 = vmatmul.bf16.gmra.mxu0 %v121
  %v137 = vpop.f32.mrf.mxu0
  %v138 = vadd.f32 %v99, %v137
  %v139 = vpop.f32.mrf.mxu0
  %v140 = vadd.f32 %v104, %v139
  %141 = vdwg.mxu0
  %v142 = vmax.f32 %v133, 0.0
  %v143 = vmax.f32 %v135, 0.0
  %v144 = vmax.f32 %v138, 0.0
  %v145 = vmax.f32 %v140, 0.0
  %v146 = vpack.c.bf16 %v143, %v142
  %v147 = vpack.c.bf16 %v145, %v144
  %v148 = vld [vmem:[%s5] sm:$0xf]
  %v149 = vld [vmem:[%s5 + $0x4] sm:$0xf]
  %v150 = vld [vmem:[%s5 + $0x8] sm:$0xf]
  %v151 = vld [vmem:[%s5 + $0xc] sm:$0xf]
  %v152 = vld [vmem:[%s5 + $0x10] sm:$0xf]
  %v153 = vld [vmem:[%s5 + $0x14] sm:$0xf]
  %v154 = vld [vmem:[%s5 + $0x18] sm:$0xf]
  %v155 = vld [vmem:[%s5 + $0x1c] sm:$0xf]
  %v156 = vld [vmem:[%s6] sm:$0xff]
  %v157 = vld [vmem:[%s6 + $0x8] sm:$0xff]
  %v158 = vld [vmem:[%s6 + $0x10] sm:$0xff]
  %v159 = vld [vmem:[%s6 + $0x18] sm:$0xff]
  %v160 = vld [vmem:[%s6 + $0x20] sm:$0xff]
  %v161 = vld [vmem:[%s6 + $0x28] sm:$0xff]
  %v162 = vld [vmem:[%s6 + $0x30] sm:$0xff]
  %v163 = vld [vmem:[%s6 + $0x38] sm:$0xff]
  %165 = vset.pattern.permute.xlu0 0
  %166 = vperm.xlu0 %165, %v156
  %v167 = vpop.permute.xlu0 %166
  %170 = vset.pattern.permute.xlu0 0
  %171 = vperm.xlu0 %170, %v157
  %v172 = vpop.permute.xlu0 %171
  %175 = vset.pattern.permute.xlu0 0
  %176 = vperm.xlu0 %175, %v158
  %v177 = vpop.permute.xlu0 %176
  %180 = vset.pattern.permute.xlu0 0
  %181 = vperm.xlu0 %180, %v159
  %v182 = vpop.permute.xlu0 %181
  %185 = vset.pattern.permute.xlu0 0
  %186 = vperm.xlu0 %185, %v160
  %v187 = vpop.permute.xlu0 %186
  %190 = vset.pattern.permute.xlu0 0
  %191 = vperm.xlu0 %190, %v161
  %v192 = vpop.permute.xlu0 %191
  %195 = vset.pattern.permute.xlu0 0
  %196 = vperm.xlu0 %195, %v162
  %v197 = vpop.permute.xlu0 %196
  %200 = vset.pattern.permute.xlu0 0
  %201 = vperm.xlu0 %200, %v163
  %v202 = vpop.permute.xlu0 %201
  %v212 = vunpack.c.l.b16 %v148
  %v213 = vunpack.c.l.b16 %v149
  %v214 = vunpack.c.l.b16 %v150
  %v215 = vunpack.c.l.b16 %v151
  %v216 = vunpack.c.l.b16 %v152
  %v217 = vunpack.c.l.b16 %v153
  %v218 = vunpack.c.l.b16 %v154
  %v219 = vunpack.c.l.b16 %v155
  %v220 = vpack.c.b16 %v213, %v212
  %v221 = vpack.c.b16 %v215, %v214
  %v222 = vpack.c.b16 %v217, %v216
  %v223 = vpack.c.b16 %v219, %v218
  %vm224 = vcmask 261120
  %v226 = vsel %vm224, %v220, 0
  %v229 = vsel %vm224, %v221, 0
  %v232 = vsel %vm224, %v222, 0
  %v235 = vsel %vm224, %v223, 0
  %237 = vmatpush.bf16.msra.mxu0 0
  %238 = vmatpush.bf16.msra.mxu0 0
  %239 = vmatpush.bf16.msra.mxu0 0
  %240 = vmatpush.bf16.msra.mxu0 0
  %241 = vmatpush.bf16.msra.mxu0 0
  %242 = vmatpush.bf16.msra.mxu0 0
  %243 = vmatpush.bf16.msra.mxu0 %v147
  %244 = vmatpush.bf16.msra.mxu0 %v146
  %245 = vmatmul.bf16.gmra.mxu0 %v226
  %v246 = vpop.f32.mrf.mxu0
  %v247 = vadd.f32 %v167, %v246
  %v248 = vpop.f32.mrf.mxu0
  %v249 = vadd.f32 %v172, %v248
  %250 = vmatmul.bf16.gmra.mxu0 %v229
  %v251 = vpop.f32.mrf.mxu0
  %v252 = vadd.f32 %v177, %v251
  %v253 = vpop.f32.mrf.mxu0
  %v254 = vadd.f32 %v182, %v253
  %255 = vmatmul.bf16.gmra.mxu0 %v232
  %v256 = vpop.f32.mrf.mxu0
  %v257 = vadd.f32 %v187, %v256
  %v258 = vpop.f32.mrf.mxu0
  %v259 = vadd.f32 %v192, %v258
  %260 = vmatmul.bf16.gmra.mxu0 %v235
  %v261 = vpop.f32.mrf.mxu0
  %v262 = vadd.f32 %v197, %v261
  %v263 = vpop.f32.mrf.mxu0
  %v264 = vadd.f32 %v202, %v263
  %265 = vdwg.mxu0
  %v266 = vmax.f32 %v247, 0.0
  %v267 = vmax.f32 %v249, 0.0
  %v268 = vmax.f32 %v252, 0.0
  %v269 = vmax.f32 %v254, 0.0
  %v270 = vmax.f32 %v257, 0.0
  %v271 = vmax.f32 %v259, 0.0
  %v272 = vmax.f32 %v262, 0.0
  %v273 = vmax.f32 %v264, 0.0
  %v274 = vpack.c.bf16 %v267, %v266
  %v275 = vpack.c.bf16 %v269, %v268
  %v276 = vpack.c.bf16 %v271, %v270
  %v277 = vpack.c.bf16 %v273, %v272
  %v278 = vld [vmem:[%s7] sm:$0xf]
  %v279 = vld [vmem:[%s8] sm:$0xff]
  %281 = vset.pattern.permute.xlu0 0
  %282 = vperm.xlu0 %281, %v279
  %v283 = vpop.permute.xlu0 %282
  %vm285 = vcmask 523264
  %v287 = vsel %vm285, %v278, 0
  %289 = vmatpush.bf16.msra.mxu0 0
  %290 = vmatpush.bf16.msra.mxu0 0
  %291 = vmatpush.bf16.msra.mxu0 0
  %292 = vmatpush.bf16.msra.mxu0 0
  %293 = vmatpush.bf16.msra.mxu0 %v277
  %294 = vmatpush.bf16.msra.mxu0 %v276
  %295 = vmatpush.bf16.msra.mxu0 %v275
  %296 = vmatpush.bf16.msra.mxu0 %v274
  %297 = vmatmul.bf16.gmra.mxu0 %v287
  %v298 = vpop.f32.mrf.mxu0
  %v299 = vadd.f32 %v283, %v298
  %v300 = vpop.f32.mrf.mxu0
  %301 = vdwg.mxu0
  %v302 = vrot.slane %v299, 4
  %v303 = vmax.f32 %v299, %v302
  %v304 = vrot.slane %v303, 2
  %v305 = vmax.f32 %v303, %v304
  %v306 = vrot.slane %v305, 1
  %v307 = vmax.f32 %v305, %v306
  %v308 = vsub.f32 %v299, %v307
  %v309 = vmul.f32 %v308, 1.442695
  %v310 = vpow.pop %v309
  %v311 = vrot.slane %v310, 4
  %v312 = vadd.f32 %v310, %v311
  %v313 = vrot.slane %v312, 2
  %v314 = vadd.f32 %v312, %v313
  %v315 = vrot.slane %v314, 1
  %v316 = vadd.f32 %v314, %v315
  %v317 = vrcp.pop %v316
  %v318 = vmul.f32 %v316, %v317
  %v319 = vsub.f32 1.0, %v318
  %v320 = vmul.f32 %v317, %v319
  %v321 = vadd.f32 %v317, %v320
  %vm322 = vweird.f32 %v316
  %vm323 = vweird.f32 %v317
  %vm324 = vmor %vm322, %vm323
  %v325 = vsel %vm324, %v317, %v321
  %v326 = vand.u32 2147483647, %v316
  %vm327 = vcmp.eq.f32.partialorder %v326, 8.507059e+37
  %v328 = vand.u32 %v316, 2147483648
  %v329 = vor.u32 1.1754944e-38, %v328
  %v330 = vsel %vm327, %v329, %v325
  %v331 = vmul.f32 %v310, %v330
  %332 = vst [vmem:[%s9] sm:$0xff] %v331
  // Predicated region
  $region38: #{emgcnn_forward.1} parent=0 // pred_check
    _
  $region39: #{emgcnn_forward.1} parent=0 // pred_check_branch
    %334 = sbr.rel (0) target = $region41
  $region40: #{emgcnn_forward.1} parent=0 // pred_region
    _
  $region41: #{emgcnn_forward.1} parent=0 // pred_fallthru
    _
  // Predicated region
  $region42: #{emgcnn_forward.1} parent=0 // pred_check
    _
  $region43: #{emgcnn_forward.1} parent=0 // pred_check_branch
    %336 = sbr.rel (0) target = $region45
  $region44: #{emgcnn_forward.1} parent=0 // pred_region
    _
  $region45: #{emgcnn_forward.1} parent=0 // pred_fallthru
    _

</llo_original>
